<compile_context>
chip_gen: v7x
topology: tpu7x:2x2x1
jax: 0.10.0
libtpu: 0.0.40
codegen_flags: <defaults>
</compile_context>

<pallas_src>
import math

import jax
import jax.numpy as jnp
from jax.experimental import pallas as pl
from jax.experimental.pallas import tpu as pltpu

_LANE = 128   # gate boundaries / hidden tile width are multiples of this


def _round_up(x, m):
    return (x + m - 1) // m * m


def _default_vmem_limit():
    """~75% of physical VMEM, capped at 100 MiB (v5e/v6e -> ~96-100 MiB, v7x -> 48 MiB)."""
    try:
        cap = pltpu.get_tpu_info().vmem_capacity_bytes
    except Exception:
        cap = 64 * 1024 * 1024
    return int(min(100 * 1024 * 1024, cap * 3 // 4))


# ---------------------------------------------------------------------------
# Kernel: one (hidden tile, batch tile) block
# ---------------------------------------------------------------------------
def lstm_cell_kernel(x_ref, hx_ref, wx_ref, wh_ref, b_ref, cx_ref, hn_ref, cn_ref):
    """
    x_ref : (tm, I)      bf16   input tile
    hx_ref: (tm, H)      bf16   previous hidden tile
    wx_ref: (I, 4*tn)    bf16   input-weight slab for this hidden tile, cols [i|f|g|o]
    wh_ref: (H, 4*tn)    bf16   hidden-weight slab for this hidden tile
    b_ref : (1, 4*tn)    f32    packed bias for this hidden tile
    cx_ref: (tm, tn)     f32    previous cell-state tile
    hn_ref: (tm, tn)     out dtype (input dtype)
    cn_ref: (tm, tn)     f32    (cell state always kept f32)
    """
    tn = hn_ref.shape[-1]

    # Two MXU dots (bf16 operands, f32 accumulation) -> fused gate pre-activations.
    gates = jnp.dot(x_ref[...], wx_ref[...], preferred_element_type=jnp.float32)
    gates += jnp.dot(hx_ref[...], wh_ref[...], preferred_element_type=jnp.float32)
    gates += b_ref[...]

    # Lane-aligned gate slices (tn is a multiple of 128).
    i = jax.nn.sigmoid(gates[:, 0 * tn:1 * tn])
    f = jax.nn.sigmoid(gates[:, 1 * tn:2 * tn])
    g = jnp.tanh(gates[:, 2 * tn:3 * tn])
    o = jax.nn.sigmoid(gates[:, 3 * tn:4 * tn])

    cn = i * g + f * cx_ref[...]
    hn = o * jnp.tanh(cn)

    hn_ref[...] = hn.astype(hn_ref.dtype)
    cn_ref[...] = cn


# ---------------------------------------------------------------------------
# Wrapper
# ---------------------------------------------------------------------------
def lstm_cell(x, hcx, params, *, tm_max=256, vmem_limit_bytes=None):
    """Single LSTMCell forward step.  Returns (hn, cn) like the PyTorch module.

    x: (B, I).  hcx: None or (hx, cx) each (B, H).  params: from pack_params.
    """
    B, I = x.shape
    H = params["hidden_size"]
    Hp = params["hidden_padded"]
    tn = params["tn"]
    assert I == params["input_size"], "input size mismatch with packed params"
    num_n = Hp // tn

    has_state = hcx is not None
    if has_state:
        hx, cx = hcx
        assert hx.shape == (B, H) and cx.shape == (B, H)
    else:
        hx = jnp.zeros((B, H), x.dtype)
        cx = jnp.zeros((B, H), jnp.float32)

    # Bias: both Linear biases when state present; input-side biases only otherwise
    # (matches the PyTorch forward, where fc_h* are skipped when hx is None).
    b_packed = params["bx"] + params["bh"] if has_state else params["bx"]

    # Batch tiling: pad only when B is actually tiled and not a multiple of tm.
    if B <= tm_max:
        tm, Bp = B, B
    else:
        tm = tm_max
        Bp = _round_up(B, tm)
    num_m = Bp // tm

    # bf16 activations in HBM (halves the DMA re-fetched per hidden tile);
    # cell state stays f32.
    x_bf = x.astype(jnp.bfloat16)
    hx_bf = hx.astype(jnp.bfloat16)
    cx_f32 = cx.astype(jnp.float32)
    if Bp != B:
        x_bf = jnp.pad(x_bf, ((0, Bp - B), (0, 0)))
        hx_bf = jnp.pad(hx_bf, ((0, Bp - B), (0, 0)))
    if Bp != B or Hp != H:
        cx_f32 = jnp.pad(cx_f32, ((0, Bp - B), (0, Hp - H)))

    out_dtype = x.dtype
    if vmem_limit_bytes is None:
        vmem_limit_bytes = _default_vmem_limit()

    # Hidden tiles outer -> the weight slab for tile j stays VMEM-resident while
    # the batch axis sweeps; both axes are independent ("parallel") so the two
    # TensorCores on v7x can shard the grid.
    grid = (num_n, num_m)

    hn_p, cn_p = pl.pallas_call(
        lstm_cell_kernel,
        out_shape=(
            jax.ShapeDtypeStruct((Bp, Hp), out_dtype),
            jax.ShapeDtypeStruct((Bp, Hp), jnp.float32),
        ),
        grid_spec=pltpu.PrefetchScalarGridSpec(
            num_scalar_prefetch=0,
            grid=grid,
            in_specs=[
                pl.BlockSpec((tm, I), lambda j, i: (i, 0)),            # x tile (bf16)
                pl.BlockSpec((tm, H), lambda j, i: (i, 0)),            # hx tile (bf16)
                pl.BlockSpec((None, I, 4 * tn), lambda j, i: (j, 0, 0)),  # Wx slab (contiguous)
                pl.BlockSpec((None, H, 4 * tn), lambda j, i: (j, 0, 0)),  # Wh slab (contiguous)
                pl.BlockSpec((None, 1, 4 * tn), lambda j, i: (j, 0, 0)),  # bias
                pl.BlockSpec((tm, tn), lambda j, i: (i, j)),           # cx tile (f32)
            ],
            out_specs=[
                pl.BlockSpec((tm, tn), lambda j, i: (i, j)),           # hn (input dtype)
                pl.BlockSpec((tm, tn), lambda j, i: (i, j)),           # cn (f32)
            ],
        ),
        compiler_params=pltpu.CompilerParams(
            dimension_semantics=("parallel", "parallel"),
            vmem_limit_bytes=vmem_limit_bytes,
        ),
    )(x_bf, hx_bf, params["wx"], params["wh"], b_packed, cx_f32)

    hn = hn_p[:B, :H]
    cn = cn_p[:B, :H]   # cell state stays f32 regardless of x.dtype
    return hn, cn


# ---------------------------------------------------------------------------
# Parameter init (matches PyTorch uniform(-k, k)) and packing
# ---------------------------------------------------------------------------
def init_params(key, input_size, hidden_size, dtype=jnp.float32):
    """Per-gate weights in math layout (in_features, out_features), gate order [i, f, g, o]."""
    k = math.sqrt(1.0 / hidden_size)
    keys = jax.random.split(key, 16)
    wx, wh, bx, bh = [], [], [], []
    for g_idx in range(4):
        wx.append(jax.random.uniform(keys[4 * g_idx + 0],
                                     (input_size, hidden_size), dtype, -k, k))
        wh.append(jax.random.uniform(keys[4 * g_idx + 1],
                                     (hidden_size, hidden_size), dtype, -k, k))
        bx.append(jax.random.uniform(keys[4 * g_idx + 2], (hidden_size,), dtype, -k, k))
        bh.append(jax.random.uniform(keys[4 * g_idx + 3], (hidden_size,), dtype, -k, k))
    return wx, wh, bx, bh


def pack_params(wx, wh, bx, bh, *, tn=256):
    """Pack the 8 projections into per-hidden-tile contiguous bf16 weight slabs.

    Returns a dict with:
      wx: (num_n, I, 4*tn) bf16, wh: (num_n, H, 4*tn) bf16,
      bx, bh: (num_n, 1, 4*tn) f32,
      plus tn / sizes (tn is baked into the layout and threaded to the kernel).
    Within each hidden tile the 4*tn columns are ordered [i|f|g|o].
    """
    I, H = wx[0].shape
    tn = max(_LANE, _round_up(min(tn, _round_up(H, _LANE)), _LANE))
    Hp = _round_up(H, tn)
    num_n = Hp // tn

    def pack_w(ws, K):
        w = jnp.zeros((K, 4, Hp), jnp.float32)
        for g_idx in range(4):
            w = w.at[:, g_idx, :H].set(ws[g_idx].astype(jnp.float32))
        # (K, 4, Hp) -> (num_n, K, 4*tn): each hidden tile's slab contiguous in HBM.
        return (w.reshape(K, 4, num_n, tn).transpose(2, 0, 1, 3)
                 .reshape(num_n, K, 4 * tn).astype(jnp.bfloat16))

    def pack_b(bs):
        b = jnp.zeros((4, Hp), jnp.float32)
        for g_idx in range(4):
            b = b.at[g_idx, :H].set(bs[g_idx].astype(jnp.float32))
        return (b.reshape(4, num_n, tn).transpose(1, 0, 2)
                 .reshape(num_n, 1, 4 * tn))

    return {
        "wx": pack_w(wx, I),
        "wh": pack_w(wh, H),
        "bx": pack_b(bx),
        "bh": pack_b(bh),
        "tn": tn,
        "input_size": I,
        "hidden_size": H,
        "hidden_padded": Hp,
    }


# ---------------------------------------------------------------------------
# Pure-JAX reference (mirrors the PyTorch forward exactly, full f32)
# ---------------------------------------------------------------------------
def lstm_cell_ref(x, hcx, wx, wh, bx, bh):
    i = x @ wx[0] + bx[0]
    f = x @ wx[1] + bx[1]
    g = x @ wx[2] + bx[2]
    o = x @ wx[3] + bx[3]
    if hcx is not None:
        hx, cx = hcx
        i = i + hx @ wh[0] + bh[0]
        f = f + hx @ wh[1] + bh[1]
        g = g + hx @ wh[2] + bh[2]
        o = o + hx @ wh[3] + bh[3]
    i, f, g, o = jax.nn.sigmoid(i), jax.nn.sigmoid(f), jnp.tanh(g), jax.nn.sigmoid(o)
    cn = i * g
    if hcx is not None:
        cn = cn + f * hcx[1]
    hn = o * jnp.tanh(cn)
    return hn, cn


if __name__ == "__main__":
    B, I, H = 8, 16, 32
    key = jax.random.PRNGKey(0)
    k_param, k_x, k_h, k_c = jax.random.split(key, 4)

    wx_g, wh_g, bx_g, bh_g = init_params(k_param, I, H)
    params = pack_params(wx_g, wh_g, bx_g, bh_g)

    x = jax.random.normal(k_x, (B, I), jnp.float32)
    hx = jax.random.normal(k_h, (B, H), jnp.float32)
    cx = jax.random.normal(k_c, (B, H), jnp.float32)

    # With (hx, cx) state.
    hn, cn = lstm_cell(x, (hx, cx), params)
    jax.block_until_ready((hn, cn))
    hn_ref, cn_ref = lstm_cell_ref(x, (hx, cx), wx_g, wh_g, bx_g, bh_g)
    assert hn.shape == (B, H) and cn.shape == (B, H)
    # bf16 matmul operands (f32 accumulate) vs. full-f32 reference -> loose tol.
    assert jnp.allclose(hn, hn_ref, atol=2e-2, rtol=0), float(jnp.max(jnp.abs(hn - hn_ref)))
    assert jnp.allclose(cn, cn_ref, atol=2e-2, rtol=0), float(jnp.max(jnp.abs(cn - cn_ref)))

    # hcx=None path (PyTorch module's optional-state branch).
    hn0, cn0 = lstm_cell(x, None, params)
    jax.block_until_ready((hn0, cn0))
    hn0_ref, cn0_ref = lstm_cell_ref(x, None, wx_g, wh_g, bx_g, bh_g)
    assert jnp.allclose(hn0, hn0_ref, atol=2e-2, rtol=0), float(jnp.max(jnp.abs(hn0 - hn0_ref)))
    assert jnp.allclose(cn0, cn0_ref, atol=2e-2, rtol=0), float(jnp.max(jnp.abs(cn0 - cn0_ref)))

    print("KERNEL_OK")
</pallas_src>

<mosaic_0001>
module attributes {stable_mosaic.version = 11 : i64} {
  func.func @lstm_cell_kernel(%arg0: i32, %arg1: i32, %arg2: memref<8x16xbf16, #tpu.memory_space<vmem>>, %arg3: memref<8x32xbf16, #tpu.memory_space<vmem>>, %arg4: memref<1x16x512xbf16, #tpu.memory_space<vmem>>, %arg5: memref<1x32x512xbf16, #tpu.memory_space<vmem>>, %arg6: memref<1x1x512xf32, #tpu.memory_space<vmem>>, %arg7: memref<8x128xf32, #tpu.memory_space<vmem>>, %arg8: memref<8x128xf32, #tpu.memory_space<vmem>>, %arg9: memref<8x128xf32, #tpu.memory_space<vmem>>) attributes {dimension_semantics = [#tpu.dimension_semantics<parallel>, #tpu.dimension_semantics<parallel>], iteration_bounds = array<i64: 1, 1>, scalar_prefetch = 0 : i64, scratch_operands = 0 : i64, tpu.core_type = #tpu.core_type<tc>, window_params = [{transform_indices = @transform_0, window_bounds = array<i64: 8, 16>}, {transform_indices = @transform_1, window_bounds = array<i64: 8, 32>}, {transform_indices = @transform_2, window_bounds = array<i64: 1, 16, 512>}, {transform_indices = @transform_3, window_bounds = array<i64: 1, 32, 512>}, {transform_indices = @transform_4, window_bounds = array<i64: 1, 1, 512>}, {transform_indices = @transform_5, window_bounds = array<i64: 8, 128>}, {transform_indices = @transform_6, window_bounds = array<i64: 8, 128>}, {transform_indices = @transform_7, window_bounds = array<i64: 8, 128>}]} {
    %c0 = arith.constant 0 : index
    %c0_0 = arith.constant 0 : index
    %0 = vector.load %arg2[%c0, %c0_0] : memref<8x16xbf16, #tpu.memory_space<vmem>>, vector<8x16xbf16>
    %c0_1 = arith.constant 0 : index
    %c0_2 = arith.constant 0 : index
    %c0_3 = arith.constant 0 : index
    %1 = vector.load %arg4[%c0_1, %c0_2, %c0_3] : memref<1x16x512xbf16, #tpu.memory_space<vmem>>, vector<1x16x512xbf16>
    %2 = vector.shape_cast %1 : vector<1x16x512xbf16> to vector<16x512xbf16>
    %cst = arith.constant dense<0.000000e+00> : vector<8x512xf32>
    %3 = tpu.matmul %0, %2, %cst {dimension_numbers = #tpu.dot_dimension_numbers<[1], [0], [0], [1], [0, 0, 1, 1], [], []>} : vector<8x16xbf16>, vector<16x512xbf16>, vector<8x512xf32> -> vector<8x512xf32>
    %c0_4 = arith.constant 0 : index
    %c0_5 = arith.constant 0 : index
    %4 = vector.load %arg3[%c0_4, %c0_5] : memref<8x32xbf16, #tpu.memory_space<vmem>>, vector<8x32xbf16>
    %c0_6 = arith.constant 0 : index
    %c0_7 = arith.constant 0 : index
    %c0_8 = arith.constant 0 : index
    %5 = vector.load %arg5[%c0_6, %c0_7, %c0_8] : memref<1x32x512xbf16, #tpu.memory_space<vmem>>, vector<1x32x512xbf16>
    %6 = vector.shape_cast %5 : vector<1x32x512xbf16> to vector<32x512xbf16>
    %cst_9 = arith.constant dense<0.000000e+00> : vector<8x512xf32>
    %7 = tpu.matmul %4, %6, %cst_9 {dimension_numbers = #tpu.dot_dimension_numbers<[1], [0], [0], [1], [0, 0, 1, 1], [], []>} : vector<8x32xbf16>, vector<32x512xbf16>, vector<8x512xf32> -> vector<8x512xf32>
    %8 = arith.addf %3, %7 : vector<8x512xf32>
    %c0_10 = arith.constant 0 : index
    %c0_11 = arith.constant 0 : index
    %c0_12 = arith.constant 0 : index
    %9 = vector.load %arg6[%c0_10, %c0_11, %c0_12] : memref<1x1x512xf32, #tpu.memory_space<vmem>>, vector<1x1x512xf32>
    %10 = vector.shape_cast %9 : vector<1x1x512xf32> to vector<1x512xf32>
    %11 = vector.broadcast %10 : vector<1x512xf32> to vector<8x512xf32>
    %12 = arith.addf %8, %11 : vector<8x512xf32>
    %13 = vector.extract_strided_slice %12 {offsets = [0, 0], sizes = [8, 128], strides = [1, 1]} : vector<8x512xf32> to vector<8x128xf32>
    %14 = arith.negf %13 : vector<8x128xf32>
    %15 = math.exp %14 : vector<8x128xf32>
    %cst_13 = arith.constant 1.000000e+00 : f32
    %16 = vector.broadcast %cst_13 : f32 to vector<8x128xf32>
    %17 = arith.addf %16, %15 : vector<8x128xf32>
    %18 = arith.divf %16, %17 : vector<8x128xf32>
    %19 = vector.extract_strided_slice %12 {offsets = [0, 128], sizes = [8, 128], strides = [1, 1]} : vector<8x512xf32> to vector<8x128xf32>
    %20 = arith.negf %19 : vector<8x128xf32>
    %21 = math.exp %20 : vector<8x128xf32>
    %cst_14 = arith.constant 1.000000e+00 : f32
    %22 = vector.broadcast %cst_14 : f32 to vector<8x128xf32>
    %23 = arith.addf %22, %21 : vector<8x128xf32>
    %24 = arith.divf %22, %23 : vector<8x128xf32>
    %25 = vector.extract_strided_slice %12 {offsets = [0, 256], sizes = [8, 128], strides = [1, 1]} : vector<8x512xf32> to vector<8x128xf32>
    %26 = math.tanh %25 : vector<8x128xf32>
    %27 = vector.extract_strided_slice %12 {offsets = [0, 384], sizes = [8, 128], strides = [1, 1]} : vector<8x512xf32> to vector<8x128xf32>
    %28 = arith.negf %27 : vector<8x128xf32>
    %29 = math.exp %28 : vector<8x128xf32>
    %cst_15 = arith.constant 1.000000e+00 : f32
    %30 = vector.broadcast %cst_15 : f32 to vector<8x128xf32>
    %31 = arith.addf %30, %29 : vector<8x128xf32>
    %32 = arith.divf %30, %31 : vector<8x128xf32>
    %33 = arith.mulf %18, %26 : vector<8x128xf32>
    %c0_16 = arith.constant 0 : index
    %c0_17 = arith.constant 0 : index
    %34 = vector.load %arg7[%c0_16, %c0_17] : memref<8x128xf32, #tpu.memory_space<vmem>>, vector<8x128xf32>
    %35 = arith.mulf %24, %34 : vector<8x128xf32>
    %36 = arith.addf %33, %35 : vector<8x128xf32>
    %37 = math.tanh %36 : vector<8x128xf32>
    %38 = arith.mulf %32, %37 : vector<8x128xf32>
    %c0_18 = arith.constant 0 : index
    %c0_19 = arith.constant 0 : index
    %39 = vector.load %arg8[%c0_18, %c0_19] : memref<8x128xf32, #tpu.memory_space<vmem>>, vector<8x128xf32>
    tpu.vector_store %arg8[%c0_18, %c0_19], %38 {strides = array<i32>} : memref<8x128xf32, #tpu.memory_space<vmem>>, vector<8x128xf32>,
    %c0_20 = arith.constant 0 : index
    %c0_21 = arith.constant 0 : index
    %40 = vector.load %arg9[%c0_20, %c0_21] : memref<8x128xf32, #tpu.memory_space<vmem>>, vector<8x128xf32>
    tpu.vector_store %arg9[%c0_20, %c0_21], %36 {strides = array<i32>} : memref<8x128xf32, #tpu.memory_space<vmem>>, vector<8x128xf32>,
    return
  }
  func.func @transform_0(%arg0: i32, %arg1: i32) -> (i32, i32) {
    %c0_i32 = arith.constant 0 : i32
    %c0_i32_0 = arith.constant 0 : i32
    return %arg1, %c0_i32 : i32, i32
  }
  func.func @transform_1(%arg0: i32, %arg1: i32) -> (i32, i32) {
    %c0_i32 = arith.constant 0 : i32
    %c0_i32_0 = arith.constant 0 : i32
    return %arg1, %c0_i32 : i32, i32
  }
  func.func @transform_2(%arg0: i32, %arg1: i32) -> (i32, i32, i32) {
    %c0_i32 = arith.constant 0 : i32
    %c0_i32_0 = arith.constant 0 : i32
    %c0_i32_1 = arith.constant 0 : i32
    return %arg0, %c0_i32, %c0_i32_0 : i32, i32, i32
  }
  func.func @transform_3(%arg0: i32, %arg1: i32) -> (i32, i32, i32) {
    %c0_i32 = arith.constant 0 : i32
    %c0_i32_0 = arith.constant 0 : i32
    %c0_i32_1 = arith.constant 0 : i32
    return %arg0, %c0_i32, %c0_i32_0 : i32, i32, i32
  }
  func.func @transform_4(%arg0: i32, %arg1: i32) -> (i32, i32, i32) {
    %c0_i32 = arith.constant 0 : i32
    %c0_i32_0 = arith.constant 0 : i32
    %c0_i32_1 = arith.constant 0 : i32
    return %arg0, %c0_i32, %c0_i32_0 : i32, i32, i32
  }
  func.func @transform_5(%arg0: i32, %arg1: i32) -> (i32, i32) {
    %c0_i32 = arith.constant 0 : i32
    return %arg1, %arg0 : i32, i32
  }
  func.func @transform_6(%arg0: i32, %arg1: i32) -> (i32, i32) {
    %c0_i32 = arith.constant 0 : i32
    return %arg1, %arg0 : i32, i32
  }
  func.func @transform_7(%arg0: i32, %arg1: i32) -> (i32, i32) {
    %c0_i32 = arith.constant 0 : i32
    return %arg1, %arg0 : i32, i32
  }
}

</mosaic_0001>

<llo_original>
// kernel: tpu_custom_call.1
$region0: #{tpu_custom_call.1}
  #allocation0 [shape = 'u32[]', space=smem, size = 0x4, offset = 0x4, fixed_abs, tag = 'smem constant byte address 0x4 - core index']
  #allocation1 [shape = 'u32[144,128]{1,0:T(1,128)}', space=vmem, size = 0x12000, scoped, tag = 'internal scratch']
  %s0 = inlined_call_operand.hbm [shape: bf16[8,16], index: 0, kind: input, shape index: {}]
  %s1 = inlined_call_operand.hbm [shape: bf16[8,32], index: 1, kind: input, shape index: {}]
  %s2 = inlined_call_operand.hbm [shape: bf16[1,16,512], index: 2, kind: input, shape index: {}]
  %s3 = inlined_call_operand.hbm [shape: bf16[1,32,512], index: 3, kind: input, shape index: {}]
  %s4 = inlined_call_operand.vmem [shape: f32[1,1,512], index: 4, kind: input, shape index: {}]
  %s5 = inlined_call_operand.vmem [shape: f32[8,128], index: 5, kind: input, shape index: {}]
  %s6 = inlined_call_operand.hbm [shape: f32[8,128], index: 6, kind: output, shape index: {0}]
  %s7 = inlined_call_operand.hbm [shape: f32[8,128], index: 7, kind: output, shape index: {1}]
  %8 = xla_tuple %s6, %s7
  %s9 = sld [smem:[#allocation0]]
  $region58: #{tpu_custom_call.1} parent=0
    _
  %s11 = ssub.s32 1, %s9
  %s12 = scalar_select 0, %s11, %s9
  $region1: #{tpu_custom_call.1} parent=0
    #allocation2 [shape = 'u8[2048]{0}', space=vmem, size = 0x800, scoped, tag = 'input window, operand 0, single buffered']
    #allocation3 [shape = 's32[1]{0}', space=sflag, size = 0x4, scoped, tag = 'scoped memory for tpu_custom_call.1']
    #allocation4 [shape = 's32[1]{0}', space=sflag, size = 0x4, scoped, tag = 'scoped memory for tpu_custom_call.1']
    #allocation5 [shape = 'u8[2048]{0}', space=vmem, size = 0x800, scoped, tag = 'input window, operand 1, single buffered']
    #allocation6 [shape = 's32[1]{0}', space=sflag, size = 0x4, scoped, tag = 'scoped memory for tpu_custom_call.1']
    #allocation7 [shape = 'u8[16384]{0}', space=vmem, size = 0x4000, scoped, tag = 'input window, operand 2, single buffered']
    #allocation8 [shape = 'u8[32768]{0}', space=vmem, size = 0x8000, scoped, tag = 'input window, operand 3, single buffered']
    #allocation9 [shape = 's32[1]{0}', space=sflag, size = 0x4, scoped, tag = 'scoped memory for tpu_custom_call.1']
    #allocation10 [shape = 'u8[4096]{0}', space=vmem, size = 0x1000, scoped, tag = 'output window, operand 0, single buffered']
    #allocation11 [shape = 'u8[4096]{0}', space=vmem, size = 0x1000, scoped, tag = 'output window, operand 1, single buffered']
    #allocation12 [shape = 's32[1]{0}', space=sflag, size = 0x4, scoped, tag = 'scoped memory for tpu_custom_call.1']
    %13 = vsyncpa [#allocation3], 0
    %14 = vsyncpa [#allocation6], 0
    %15 = vsyncpa [#allocation9], 0
    %16 = vsyncpa [#allocation4], 0
    %17 = vsyncpa [#allocation12], 0
    // Predicated region
    $region2: #{tpu_custom_call.1} parent=1 // pred_check
      _
    $region3: #{tpu_custom_call.1} parent=1 // pred_check_branch
      %19 = sbr.rel (0) target = $region5
    $region4: #{tpu_custom_call.1} parent=1 // pred_region
      %s21 = ssub.s32 64, 64
      %22 = vsyncadd [#allocation3], %s21
      %s24 = sshll.u32 [#allocation2], 4
      %s25 = int_to_ptr.vmem [resolvable:$true] %s24
      %27 = dma.hbm_to_vmem [thread:$0]  %s0, 64, %s25, [#allocation3]
    $region5: #{tpu_custom_call.1} parent=1 // pred_fallthru
      _
    // Predicated region
    $region6: #{tpu_custom_call.1} parent=1 // pred_check
      _
    $region7: #{tpu_custom_call.1} parent=1 // pred_check_branch
      %29 = sbr.rel (0) target = $region9
    $region8: #{tpu_custom_call.1} parent=1 // pred_region
      %s31 = ssub.s32 64, 64
      %32 = vsyncadd [#allocation6], %s31
      %s34 = sshll.u32 [#allocation5], 4
      %s35 = int_to_ptr.vmem [resolvable:$true] %s34
      %37 = dma.hbm_to_vmem [thread:$0]  %s1, 64, %s35, [#allocation6]
    $region9: #{tpu_custom_call.1} parent=1 // pred_fallthru
      _
    // Predicated region
    $region10: #{tpu_custom_call.1} parent=1 // pred_check
      _
    $region11: #{tpu_custom_call.1} parent=1 // pred_check_branch
      %39 = sbr.rel (0) target = $region13
    $region12: #{tpu_custom_call.1} parent=1 // pred_region
      %s41 = ssub.s32 512, 512
      %42 = vsyncadd [#allocation6], %s41
      %s43 = sshll.u32 [#allocation7], 4
      %s44 = int_to_ptr.vmem [resolvable:$true] %s43
      %49 = dma.hbm_to_vmem [thread:$0]  %s2, 512, %s44, [#allocation6], 256, 256, 16
    $region13: #{tpu_custom_call.1} parent=1 // pred_fallthru
      _
    // Predicated region
    $region14: #{tpu_custom_call.1} parent=1 // pred_check
      _
    $region15: #{tpu_custom_call.1} parent=1 // pred_check_branch
      %51 = sbr.rel (0) target = $region17
    $region16: #{tpu_custom_call.1} parent=1 // pred_region
      %s53 = ssub.s32 1024, 1024
      %54 = vsyncadd [#allocation9], %s53
      %s55 = sshll.u32 [#allocation8], 4
      %s56 = int_to_ptr.vmem [resolvable:$true] %s55
      %61 = dma.hbm_to_vmem [thread:$0]  %s3, 1024, %s56, [#allocation9], 256, 256, 16
    $region17: #{tpu_custom_call.1} parent=1 // pred_fallthru
      _
    // Predicated region
    $region18: #{tpu_custom_call.1} parent=1 // pred_check
      _
    $region19: #{tpu_custom_call.1} parent=1 // pred_check_branch
      %63 = sbr.rel (0) target = $region21
    $region20: #{tpu_custom_call.1} parent=1 // pred_region
      _
    $region21: #{tpu_custom_call.1} parent=1 // pred_fallthru
      _
    // Predicated region
    $region22: #{tpu_custom_call.1} parent=1 // pred_check
      _
    $region23: #{tpu_custom_call.1} parent=1 // pred_check_branch
      %65 = sbr.rel (0) target = $region25
    $region24: #{tpu_custom_call.1} parent=1 // pred_region
      _
    $region25: #{tpu_custom_call.1} parent=1 // pred_fallthru
      _
    // Predicated region
    $region26: #{tpu_custom_call.1} parent=1 // pred_check
      _
    $region27: #{tpu_custom_call.1} parent=1 // pred_check_branch
      %67 = sbr.rel (0) target = $region29
    $region28: #{tpu_custom_call.1} parent=1 // pred_region
      %68 = dma.done [#allocation3], 64
    $region29: #{tpu_custom_call.1} parent=1 // pred_fallthru
      _
    // Predicated region
    $region30: #{tpu_custom_call.1} parent=1 // pred_check
      _
    $region31: #{tpu_custom_call.1} parent=1 // pred_check_branch
      %70 = sbr.rel (0) target = $region33
    $region32: #{tpu_custom_call.1} parent=1 // pred_region
      %71 = dma.done [#allocation6], 64
    $region33: #{tpu_custom_call.1} parent=1 // pred_fallthru
      _
    // Predicated region
    $region34: #{tpu_custom_call.1} parent=1 // pred_check
      _
    $region35: #{tpu_custom_call.1} parent=1 // pred_check_branch
      %73 = sbr.rel (0) target = $region37
    $region36: #{tpu_custom_call.1} parent=1 // pred_region
      %74 = dma.done [#allocation6], 512
    $region37: #{tpu_custom_call.1} parent=1 // pred_fallthru
      _
    // Predicated region
    $region38: #{tpu_custom_call.1} parent=1 // pred_check
      _
    $region39: #{tpu_custom_call.1} parent=1 // pred_check_branch
      %76 = sbr.rel (0) target = $region41
    $region40: #{tpu_custom_call.1} parent=1 // pred_region
      %77 = dma.done [#allocation9], 1024
    $region41: #{tpu_custom_call.1} parent=1 // pred_fallthru
      _
    %v79 = vld [vmem:[#allocation2] sm:$0xf]
    %v80 = vld [vmem:[#allocation7] sm:$0xff]
    %v81 = vld [vmem:[#allocation7 + $0x8] sm:$0xff]
    %v82 = vld [vmem:[#allocation7 + $0x10] sm:$0xff]
    %v83 = vld [vmem:[#allocation7 + $0x18] sm:$0xff]
    %v84 = vld [vmem:[#allocation5] sm:$0xf]
    %v85 = vld [vmem:[#allocation8] sm:$0xff]
    %v86 = vld [vmem:[#allocation8 + $0x8] sm:$0xff]
    %v87 = vld [vmem:[#allocation8 + $0x10] sm:$0xff]
    %v88 = vld [vmem:[#allocation8 + $0x18] sm:$0xff]
    %v89 = vld [vmem:[#allocation8 + $0x20] sm:$0xff]
    %v90 = vld [vmem:[#allocation8 + $0x28] sm:$0xff]
    %v91 = vld [vmem:[#allocation8 + $0x30] sm:$0xff]
    %v92 = vld [vmem:[#allocation8 + $0x38] sm:$0xff]
    %v101 = vunpack.c.l.b16 %v85
    %v102 = vunpack.c.h.b16 %v85
    %v103 = vunpack.c.l.b16 %v86
    %v104 = vunpack.c.h.b16 %v86
    %v105 = vunpack.c.l.b16 %v87
    %v106 = vunpack.c.h.b16 %v87
    %v107 = vunpack.c.l.b16 %v88
    %v108 = vunpack.c.h.b16 %v88
    %v109 = vunpack.c.l.b16 %v89
    %v110 = vunpack.c.h.b16 %v89
    %v111 = vunpack.c.l.b16 %v90
    %v112 = vunpack.c.h.b16 %v90
    %v113 = vunpack.c.l.b16 %v91
    %v114 = vunpack.c.h.b16 %v91
    %v115 = vunpack.c.l.b16 %v92
    %v116 = vunpack.c.h.b16 %v92
    %v117 = vpack.c.b16 %v105, %v101
    %v118 = vpack.c.b16 %v106, %v102
    %v119 = vpack.c.b16 %v107, %v103
    %v120 = vpack.c.b16 %v108, %v104
    %v121 = vpack.c.b16 %v113, %v109
    %v122 = vpack.c.b16 %v114, %v110
    %v123 = vpack.c.b16 %v115, %v111
    %v124 = vpack.c.b16 %v116, %v112
    %vm133 = vcmask 261120
    %v135 = vsel %vm133, %v84, 0
    %137 = vmatprep.subr.bf16.mxu0 %v118
    %138 = vmatpush1.bf16.msra.mxu0 %v117
    %139 = vmatprep.subr.bf16.mxu0 %v122
    %140 = vmatpush1.bf16.msra.mxu0 %v121
    %141 = vmatprep.subr.bf16.mxu0 0
    %142 = vmatpush1.bf16.msra.mxu0 0
    %143 = vmatprep.subr.bf16.mxu0 0
    %144 = vmatpush1.bf16.msra.mxu0 0
    %145 = vmatprep.subr.bf16.mxu0 0
    %146 = vmatpush1.bf16.msra.mxu0 0
    %147 = vmatprep.subr.bf16.mxu0 0
    %148 = vmatpush1.bf16.msra.mxu0 0
    %149 = vmatprep.subr.bf16.mxu0 0
    %150 = vmatpush1.bf16.msra.mxu0 0
    %151 = vmatprep.subr.bf16.mxu0 0
    %152 = vmatpush1.bf16.msra.mxu0 0
    %153 = vmatprep.subr.bf16.mxu0 0
    %154 = vmatpush1.bf16.msra.mxu0 0
    %155 = vmatprep.subr.bf16.mxu0 0
    %156 = vmatpush1.bf16.msra.mxu0 0
    %157 = vmatprep.subr.bf16.mxu0 0
    %158 = vmatpush1.bf16.msra.mxu0 0
    %159 = vmatprep.subr.bf16.mxu0 0
    %160 = vmatpush1.bf16.msra.mxu0 0
    %161 = vmatprep.subr.bf16.mxu0 0
    %162 = vmatpush1.bf16.msra.mxu0 0
    %163 = vmatprep.subr.bf16.mxu0 0
    %164 = vmatpush1.bf16.msra.mxu0 0
    %165 = vmatprep.subr.bf16.mxu0 0
    %166 = vmatpush1.bf16.msra.mxu0 0
    %167 = vmatprep.subr.bf16.mxu0 0
    %168 = vmatpush1.bf16.msra.mxu0 0
    %169 = vmatprep.mubr.bf16.mxu0 0
    %170 = vmatmul.mubr.bf16.gmra.mrb[0].mxu0 %v135
    %v171 = vpop.f32.mrb[0].mxu0
    %v172 = vadd.f32 0.0, %v171
    %v173 = vpop.f32.mrb[0].mxu0
    %v174 = vadd.f32 0.0, %v173
    %v175 = vpop.f32.mrb[0].mxu0
    %v176 = vpop.f32.mrb[0].mxu0
    %177 = vdwg.mxu0
    %178 = vmatprep.subr.bf16.mxu0 %v120
    %179 = vmatpush1.bf16.msra.mxu0 %v119
    %180 = vmatprep.subr.bf16.mxu0 %v124
    %181 = vmatpush1.bf16.msra.mxu0 %v123
    %182 = vmatprep.subr.bf16.mxu0 0
    %183 = vmatpush1.bf16.msra.mxu0 0
    %184 = vmatprep.subr.bf16.mxu0 0
    %185 = vmatpush1.bf16.msra.mxu0 0
    %186 = vmatprep.subr.bf16.mxu0 0
    %187 = vmatpush1.bf16.msra.mxu0 0
    %188 = vmatprep.subr.bf16.mxu0 0
    %189 = vmatpush1.bf16.msra.mxu0 0
    %190 = vmatprep.subr.bf16.mxu0 0
    %191 = vmatpush1.bf16.msra.mxu0 0
    %192 = vmatprep.subr.bf16.mxu0 0
    %193 = vmatpush1.bf16.msra.mxu0 0
    %194 = vmatprep.subr.bf16.mxu0 0
    %195 = vmatpush1.bf16.msra.mxu0 0
    %196 = vmatprep.subr.bf16.mxu0 0
    %197 = vmatpush1.bf16.msra.mxu0 0
    %198 = vmatprep.subr.bf16.mxu0 0
    %199 = vmatpush1.bf16.msra.mxu0 0
    %200 = vmatprep.subr.bf16.mxu0 0
    %201 = vmatpush1.bf16.msra.mxu0 0
    %202 = vmatprep.subr.bf16.mxu0 0
    %203 = vmatpush1.bf16.msra.mxu0 0
    %204 = vmatprep.subr.bf16.mxu0 0
    %205 = vmatpush1.bf16.msra.mxu0 0
    %206 = vmatprep.subr.bf16.mxu0 0
    %207 = vmatpush1.bf16.msra.mxu0 0
    %208 = vmatprep.subr.bf16.mxu0 0
    %209 = vmatpush1.bf16.msra.mxu0 0
    %210 = vmatprep.mubr.bf16.mxu0 0
    %211 = vmatmul.mubr.bf16.gmra.mrb[0].mxu0 %v135
    %v212 = vpop.f32.mrb[0].mxu0
    %v213 = vadd.f32 0.0, %v212
    %v214 = vpop.f32.mrb[0].mxu0
    %v215 = vadd.f32 0.0, %v214
    %v216 = vpop.f32.mrb[0].mxu0
    %v217 = vpop.f32.mrb[0].mxu0
    %218 = vdwg.mxu0
    %v223 = vunpack.c.l.b16 %v80
    %v224 = vunpack.c.h.b16 %v80
    %v225 = vunpack.c.l.b16 %v81
    %v226 = vunpack.c.h.b16 %v81
    %v227 = vunpack.c.l.b16 %v82
    %v228 = vunpack.c.h.b16 %v82
    %v229 = vunpack.c.l.b16 %v83
    %v230 = vunpack.c.h.b16 %v83
    %v231 = vpack.c.b16 %v227, %v223
    %v232 = vpack.c.b16 %v228, %v224
    %v233 = vpack.c.b16 %v229, %v225
    %v234 = vpack.c.b16 %v230, %v226
    %vm239 = vcmask 130048
    %v241 = vsel %vm239, %v79, 0
    %243 = vmatprep.subr.bf16.mxu0 %v232
    %244 = vmatpush1.bf16.msra.mxu0 %v231
    %245 = vmatprep.subr.bf16.mxu0 0
    %246 = vmatpush1.bf16.msra.mxu0 0
    %247 = vmatprep.subr.bf16.mxu0 0
    %248 = vmatpush1.bf16.msra.mxu0 0
    %249 = vmatprep.subr.bf16.mxu0 0
    %250 = vmatpush1.bf16.msra.mxu0 0
    %251 = vmatprep.subr.bf16.mxu0 0
    %252 = vmatpush1.bf16.msra.mxu0 0
    %253 = vmatprep.subr.bf16.mxu0 0
    %254 = vmatpush1.bf16.msra.mxu0 0
    %255 = vmatprep.subr.bf16.mxu0 0
    %256 = vmatpush1.bf16.msra.mxu0 0
    %257 = vmatprep.subr.bf16.mxu0 0
    %258 = vmatpush1.bf16.msra.mxu0 0
    %259 = vmatprep.subr.bf16.mxu0 0
    %260 = vmatpush1.bf16.msra.mxu0 0
    %261 = vmatprep.subr.bf16.mxu0 0
    %262 = vmatpush1.bf16.msra.mxu0 0
    %263 = vmatprep.subr.bf16.mxu0 0
    %264 = vmatpush1.bf16.msra.mxu0 0
    %265 = vmatprep.subr.bf16.mxu0 0
    %266 = vmatpush1.bf16.msra.mxu0 0
    %267 = vmatprep.subr.bf16.mxu0 0
    %268 = vmatpush1.bf16.msra.mxu0 0
    %269 = vmatprep.subr.bf16.mxu0 0
    %270 = vmatpush1.bf16.msra.mxu0 0
    %271 = vmatprep.subr.bf16.mxu0 0
    %272 = vmatpush1.bf16.msra.mxu0 0
    %273 = vmatprep.subr.bf16.mxu0 0
    %274 = vmatpush1.bf16.msra.mxu0 0
    %275 = vmatprep.mubr.bf16.mxu0 0
    %276 = vmatmul.mubr.bf16.gmra.mrb[0].mxu0 %v241
    %v277 = vpop.f32.mrb[0].mxu0
    %v278 = vadd.f32 %v172, %v277
    %v279 = vpop.f32.mrb[0].mxu0
    %v280 = vadd.f32 %v174, %v279
    %v281 = vpop.f32.mrb[0].mxu0
    %v282 = vpop.f32.mrb[0].mxu0
    %283 = vdwg.mxu0
    %284 = vmatprep.subr.bf16.mxu0 %v234
    %285 = vmatpush1.bf16.msra.mxu0 %v233
    %286 = vmatprep.subr.bf16.mxu0 0
    %287 = vmatpush1.bf16.msra.mxu0 0
    %288 = vmatprep.subr.bf16.mxu0 0
    %289 = vmatpush1.bf16.msra.mxu0 0
    %290 = vmatprep.subr.bf16.mxu0 0
    %291 = vmatpush1.bf16.msra.mxu0 0
    %292 = vmatprep.subr.bf16.mxu0 0
    %293 = vmatpush1.bf16.msra.mxu0 0
    %294 = vmatprep.subr.bf16.mxu0 0
    %295 = vmatpush1.bf16.msra.mxu0 0
    %296 = vmatprep.subr.bf16.mxu0 0
    %297 = vmatpush1.bf16.msra.mxu0 0
    %298 = vmatprep.subr.bf16.mxu0 0
    %299 = vmatpush1.bf16.msra.mxu0 0
    %300 = vmatprep.subr.bf16.mxu0 0
    %301 = vmatpush1.bf16.msra.mxu0 0
    %302 = vmatprep.subr.bf16.mxu0 0
    %303 = vmatpush1.bf16.msra.mxu0 0
    %304 = vmatprep.subr.bf16.mxu0 0
    %305 = vmatpush1.bf16.msra.mxu0 0
    %306 = vmatprep.subr.bf16.mxu0 0
    %307 = vmatpush1.bf16.msra.mxu0 0
    %308 = vmatprep.subr.bf16.mxu0 0
    %309 = vmatpush1.bf16.msra.mxu0 0
    %310 = vmatprep.subr.bf16.mxu0 0
    %311 = vmatpush1.bf16.msra.mxu0 0
    %312 = vmatprep.subr.bf16.mxu0 0
    %313 = vmatpush1.bf16.msra.mxu0 0
    %314 = vmatprep.subr.bf16.mxu0 0
    %315 = vmatpush1.bf16.msra.mxu0 0
    %316 = vmatprep.mubr.bf16.mxu0 0
    %317 = vmatmul.mubr.bf16.gmra.mrb[0].mxu0 %v241
    %v318 = vpop.f32.mrb[0].mxu0
    %v319 = vadd.f32 %v213, %v318
    %v320 = vpop.f32.mrb[0].mxu0
    %v321 = vadd.f32 %v215, %v320
    %v322 = vpop.f32.mrb[0].mxu0
    %v323 = vpop.f32.mrb[0].mxu0
    %324 = vdwg.mxu0
    %v325 = vld [vmem:[%s4] sm:$0xf]
    %v327 = vlaneseq
    %v328 = vshrl.u32 %v327, 7
    %v329 = vsub.s32 0, %v328
    %v330 = vrot.slane %v325, %v329
    %v331 = vlaneseq
    %v332 = vshrl.u32 %v331, 7
    %v333 = vsub.s32 1, %v332
    %v334 = vrot.slane %v325, %v333
    %v335 = vlaneseq
    %v336 = vshrl.u32 %v335, 7
    %v337 = vsub.s32 2, %v336
    %v338 = vrot.slane %v325, %v337
    %v339 = vlaneseq
    %v340 = vshrl.u32 %v339, 7
    %v341 = vsub.s32 3, %v340
    %v342 = vrot.slane %v325, %v341
    %v347 = vadd.f32 %v278, %v330
    %v348 = vadd.f32 %v280, %v334
    %v349 = vadd.f32 %v319, %v338
    %v350 = vadd.f32 %v321, %v342
    %v351 = vxor.u32 %v347, 2147483648
    %v352 = vmul.f32 %v351, 1.442695
    %v353 = vpow.pop %v352
    %v354 = vadd.f32 %v353, 1.0
    %v355 = vrcp.pop %v354
    %v356 = vmul.f32 1.0, %v355
    %v357 = vxor.u32 %v348, 2147483648
    %v358 = vmul.f32 %v357, 1.442695
    %v359 = vpow.pop %v358
    %v360 = vadd.f32 %v359, 1.0
    %v361 = vrcp.pop %v360
    %v362 = vmul.f32 1.0, %v361
    %v363 = vtanh.pop %v349
    %v364 = vxor.u32 %v350, 2147483648
    %v365 = vmul.f32 %v364, 1.442695
    %v366 = vpow.pop %v365
    %v367 = vadd.f32 %v366, 1.0
    %v368 = vrcp.pop %v367
    %v369 = vmul.f32 1.0, %v368
    %v370 = vmul.f32 %v356, %v363
    %v371 = vld [vmem:[%s5] sm:$0xff]
    %v372 = vmul.f32 %v362, %v371
    %v373 = vadd.f32 %v370, %v372
    %v374 = vtanh.pop %v373
    %v375 = vmul.f32 %v369, %v374
    %376 = vst [vmem:[#allocation10] sm:$0xff] %v375
    %377 = vst [vmem:[#allocation11] sm:$0xff] %v373
    // Predicated region
    $region42: #{tpu_custom_call.1} parent=1 // pred_check
      _
    $region43: #{tpu_custom_call.1} parent=1 // pred_check_branch
      %379 = sbr.rel (0) target = $region45
    $region44: #{tpu_custom_call.1} parent=1 // pred_region
      %s381 = ssub.s32 128, 128
      %382 = vsyncadd [#allocation4], %s381
      %s384 = sshll.u32 [#allocation10], 4
      %s385 = int_to_ptr.vmem [resolvable:$true] %s384
      %387 = dma.vmem_to_hbm [thread:$0]  %s385, 128, %s6, [#allocation4]
    $region45: #{tpu_custom_call.1} parent=1 // pred_fallthru
      _
    // Predicated region
    $region46: #{tpu_custom_call.1} parent=1 // pred_check
      _
    $region47: #{tpu_custom_call.1} parent=1 // pred_check_branch
      %389 = sbr.rel (0) target = $region49
    $region48: #{tpu_custom_call.1} parent=1 // pred_region
      %s391 = ssub.s32 128, 128
      %392 = vsyncadd [#allocation12], %s391
      %s394 = sshll.u32 [#allocation11], 4
      %s395 = int_to_ptr.vmem [resolvable:$true] %s394
      %397 = dma.vmem_to_hbm [thread:$0]  %s395, 128, %s7, [#allocation12]
    $region49: #{tpu_custom_call.1} parent=1 // pred_fallthru
      _
    // Predicated region
    $region50: #{tpu_custom_call.1} parent=1 // pred_check
      _
    $region51: #{tpu_custom_call.1} parent=1 // pred_check_branch
      %399 = sbr.rel (0) target = $region53
    $region52: #{tpu_custom_call.1} parent=1 // pred_region
      %400 = dma.done [#allocation4], 128
    $region53: #{tpu_custom_call.1} parent=1 // pred_fallthru
      _
    // Predicated region
    $region54: #{tpu_custom_call.1} parent=1 // pred_check
      _
    $region55: #{tpu_custom_call.1} parent=1 // pred_check_branch
      %402 = sbr.rel (0) target = $region57
    $region56: #{tpu_custom_call.1} parent=1 // pred_region
      %403 = dma.done [#allocation12], 128
    $region57: #{tpu_custom_call.1} parent=1 // pred_fallthru
      _
    %404 = vsyncpa [#allocation3], 1
    %405 = vsyncpa [#allocation6], 1
    %406 = vsyncpa [#allocation9], 1
    %407 = vsyncpa [#allocation4], 1
    %408 = vsyncpa [#allocation12], 1

</llo_original>
